<compile_context>
chip_gen: v5e
topology: v5e:2x2
jax: 0.10.0
libtpu: 0.0.40
codegen_flags: <defaults>
</compile_context>

<pallas_src>
import functools

import jax
import jax.numpy as jnp
from jax.experimental import pallas as pl
from jax.experimental.pallas import tpu as pltpu

_MIB = 1024 * 1024


def _tpu_config():
    """Best-effort query of per-core VMEM capacity and TensorCores per chip."""
    vmem_cap = 128 * _MIB
    num_tc = 1
    try:
        info = pltpu.get_tpu_info()
        vmem_cap = int(getattr(info, "vmem_capacity_bytes", vmem_cap))
    except Exception:
        pass
    try:
        kind = (getattr(jax.devices()[0], "device_kind", "") or "").lower()
        if "v7" in kind or "7x" in kind:
            num_tc = 2
    except Exception:
        pass
    if vmem_cap <= 64 * _MIB:        # v7x: 64 MiB per TC, 2 TCs per chip
        num_tc = max(num_tc, 2)
    return vmem_cap, num_tc


def _pick_tile_n(n, c, itemsize, num_splits, vmem_limit_bytes, max_logits_bytes):
    """Row-block size from the true VMEM working set (multiple of 16 rows)."""
    c_pad = ((c + 127) // 128) * 128
    # Per-row working set:
    #   input block x2 (double buffered) + target block x2 (lane-padded int32)
    #   + f32 upcast / exp temporaries (2 copies for sub-f32 inputs, 1 for f32).
    temp_copies = 2 if itemsize < 4 else 1
    per_row = 2 * c_pad * itemsize + 2 * 128 * 4 + temp_copies * c_pad * 4
    budget = int(vmem_limit_bytes * 0.7)                 # leave pipeline headroom
    t = max(16, budget // per_row)
    t = min(t, max(16, max_logits_bytes // max(1, c_pad * itemsize)))
    t = min(t, 8192)
    needed = -(-n // num_splits)                         # rows each split covers
    needed = ((needed + 15) // 16) * 16
    t = min(t, max(needed, 16))
    t = max(16, (t // 16) * 16)                          # bf16 sublane packing
    return int(t)


def _ls_ce_kernel(x_ref, t_ref, out_ref, acc_ref,
                  *, ignore_index, n_rows, n_classes, tile_n, chunks_per_split):
    i = pl.program_id(0)          # split ("parallel" axis -> megacore on v7x)
    j = pl.program_id(1)          # chunk within split ("arbitrary" reduction axis)

    @pl.when(j == 0)
    def _init():
        acc_ref[...] = jnp.zeros_like(acc_ref)

    x = x_ref[...].astype(jnp.float32)        # (tile_n, C)
    t = t_ref[...]                            # (tile_n, 1) int32

    # log-softmax pieces with no materialized shifted/logp tensor:
    #   lse = m + log(sum_c exp(x - m));  -sum_c logp = C*lse - sum_c x
    #   -logp[target] = lse - x[target]
    m = jnp.max(x, axis=-1, keepdims=True)                       # (tile_n, 1)
    sumexp = jnp.sum(jnp.exp(x - m), axis=-1, keepdims=True)     # x-m fuses into exp
    lse = m + jnp.log(sumexp)                                    # (tile_n, 1)
    row_sum = jnp.sum(x, axis=-1, keepdims=True)                 # (tile_n, 1)

    # Row-validity mask for padded rows beyond the real N.
    row0 = (i * chunks_per_split + j) * tile_n
    local = jax.lax.broadcasted_iota(jnp.int32, (tile_n, 1), 0)
    row_valid = ((row0 + local) < n_rows).astype(jnp.float32)

    smooth_row = (n_classes * lse - row_sum) * row_valid         # (tile_n, 1)

    # NLL: valid rows match exactly one class; ignored / padded rows masked.
    cls = jax.lax.broadcasted_iota(jnp.int32, x.shape, 1)
    picked = jnp.sum(jnp.where(cls == t, x, 0.0), axis=-1, keepdims=True)
    valid = (t != ignore_index).astype(jnp.float32)
    nll_row = (lse - picked) * valid

    # Per-step sublane reduce into a tiny (8,128) accumulator (XLU has slack in
    # this HBM-bound kernel); avoids 3x (tile_n,128)-padded scratch buffers.
    s = jnp.sum(smooth_row)
    nl = jnp.sum(nll_row)
    cn = jnp.sum(valid)
    sub = jax.lax.broadcasted_iota(jnp.int32, (8, 128), 0)
    step = jnp.where(sub == 0, s,
           jnp.where(sub == 1, nl,
           jnp.where(sub == 2, cn, 0.0))).astype(jnp.float32)
    acc_ref[...] += step

    @pl.when(j == pl.num_programs(1) - 1)
    def _finalize():
        out_ref[...] = acc_ref[...][None, :, :]       # lane-dense unmasked store


def label_smoothing_cross_entropy(output, target, *, eps=0.1, ignore_index=-100,
                                  num_splits=None, tile_n=None,
                                  vmem_limit_bytes=None):
    """output: [N, C] float (f32 or bf16), target: [N] int. Scalar f32 loss ('mean')."""
    n, c = output.shape
    itemsize = jnp.dtype(output.dtype).itemsize

    vmem_cap, num_tc = _tpu_config()
    if num_splits is None:
        num_splits = num_tc                       # 2 only on v7x (two TensorCores)
    if vmem_limit_bytes is None:
        vmem_limit_bytes = 48 * _MIB if vmem_cap <= 64 * _MIB else 64 * _MIB
    max_logits_bytes = 8 * _MIB if vmem_cap <= 64 * _MIB else 16 * _MIB
    if tile_n is None:
        tile_n = _pick_tile_n(n, c, itemsize, num_splits,
                              vmem_limit_bytes, max_logits_bytes)

    # Pad rows to a multiple of tile_n * num_splits; padded targets -> ignore_index.
    block_rows = tile_n * num_splits
    n_pad = ((n + block_rows - 1) // block_rows) * block_rows
    tgt = target.astype(jnp.int32)
    if n_pad != n:
        output = jnp.pad(output, ((0, n_pad - n), (0, 0)))
        tgt = jnp.pad(tgt, (0, n_pad - n), constant_values=ignore_index)
    t2d = tgt.reshape(n_pad, 1)
    chunks_per_split = n_pad // block_rows

    kernel = functools.partial(
        _ls_ce_kernel, ignore_index=ignore_index, n_rows=n, n_classes=c,
        tile_n=tile_n, chunks_per_split=chunks_per_split)

    cost = pl.CostEstimate(
        flops=5 * n * c,
        transcendentals=n * c + 2 * n,
        bytes_accessed=n * c * itemsize + n * 4 + num_splits * 8 * 128 * 4)

    partials = pl.pallas_call(
        kernel,
        out_shape=jax.ShapeDtypeStruct((num_splits, 8, 128), jnp.float32),
        grid_spec=pltpu.PrefetchScalarGridSpec(
            num_scalar_prefetch=0,
            grid=(num_splits, chunks_per_split),
            in_specs=[
                pl.BlockSpec((tile_n, c),
                             lambda i, j: (i * chunks_per_split + j, 0)),
                pl.BlockSpec((tile_n, 1),
                             lambda i, j: (i * chunks_per_split + j, 0)),
            ],
            out_specs=pl.BlockSpec((1, 8, 128), lambda i, j: (i, 0, 0)),
            scratch_shapes=[pltpu.VMEM((8, 128), jnp.float32)],
        ),
        compiler_params=pltpu.CompilerParams(
            dimension_semantics=("parallel", "arbitrary"),
            vmem_limit_bytes=vmem_limit_bytes),
        cost_estimate=cost,
    )(output, t2d)

    smooth_sum = jnp.sum(partials[:, 0, 0])
    nll_sum = jnp.sum(partials[:, 1, 0])
    cnt = jnp.sum(partials[:, 2, 0])
    # reduction='mean': smooth averages over ALL rows (fastai-style, matches the
    # spec module); nll over valid rows only.
    # NOTE: like torch's nll_loss('mean'), result is NaN if no row is valid.
    smooth_mean = smooth_sum / jnp.float32(n)
    nll_mean = nll_sum / cnt
    return smooth_mean * (eps / c) + (1.0 - eps) * nll_mean


def _reference(output, target, eps=0.1, ignore_index=-100):
    logp = jax.nn.log_softmax(output.astype(jnp.float32), axis=-1)
    c = output.shape[-1]
    smooth = jnp.mean(-jnp.sum(logp, axis=-1))
    valid = target != ignore_index
    safe_t = jnp.where(valid, target, 0)
    picked = -jnp.take_along_axis(logp, safe_t[:, None], axis=-1)[:, 0]
    nll = jnp.sum(jnp.where(valid, picked, 0.0)) / jnp.sum(valid)
    return smooth * eps / c + (1.0 - eps) * nll


if __name__ == "__main__":
    key = jax.random.PRNGKey(0)
    k1, k2, k3 = jax.random.split(key, 3)

    N, C = 16, 32
    logits = jax.random.normal(k1, (N, C), dtype=jnp.float32)
    target = jax.random.randint(k2, (N,), 0, C, dtype=jnp.int32)
    # mark a couple of rows as ignored
    ignore_mask = jax.random.bernoulli(k3, 0.2, (N,))
    target = jnp.where(ignore_mask, -100, target).astype(jnp.int32)

    loss = label_smoothing_cross_entropy(logits, target)
    loss = jax.block_until_ready(loss)

    ref = _reference(logits, target)
    assert jnp.allclose(loss, ref, atol=1e-5, rtol=1e-5), (loss, ref)
    print("KERNEL_OK")
</pallas_src>

<mosaic_0001>
module attributes {stable_mosaic.version = 11 : i64} {
  func.func @_ls_ce_kernel(%arg0: i32, %arg1: i32, %arg2: memref<16x32xf32, #tpu.memory_space<vmem>>, %arg3: memref<16x1xi32, #tpu.memory_space<vmem>>, %arg4: memref<1x8x128xf32, #tpu.memory_space<vmem>>, %arg5: memref<8x128xf32, #tpu.memory_space<vmem>>) attributes {dimension_semantics = [#tpu.dimension_semantics<parallel>, #tpu.dimension_semantics<arbitrary>], iteration_bounds = array<i64: 1, 1>, scalar_prefetch = 0 : i64, scratch_operands = 1 : i64, tpu.core_type = #tpu.core_type<tc>, window_params = [{transform_indices = @transform_0, window_bounds = array<i64: 16, 32>}, {transform_indices = @transform_1, window_bounds = array<i64: 16, 1>}, {transform_indices = @transform_2, window_bounds = array<i64: 1, 8, 128>}]} {
    %c0_i32 = arith.constant 0 : i32
    %0 = arith.cmpi eq, %arg1, %c0_i32 : i32
    %1 = arith.extui %0 : i1 to i32
    %c0_i32_0 = arith.constant 0 : i32
    %2 = arith.cmpi ne, %1, %c0_i32_0 : i32
    scf.if %2 {
      %cst_22 = arith.constant 0.000000e+00 : f32
      %75 = vector.broadcast %cst_22 : f32 to vector<8x128xf32>
      %c0_23 = arith.constant 0 : index
      %c0_24 = arith.constant 0 : index
      %76 = vector.load %arg5[%c0_23, %c0_24] : memref<8x128xf32, #tpu.memory_space<vmem>>, vector<8x128xf32>
      tpu.vector_store %arg5[%c0_23, %c0_24], %75 {strides = array<i32>} : memref<8x128xf32, #tpu.memory_space<vmem>>, vector<8x128xf32>,
    } else {
    }
    %c0 = arith.constant 0 : index
    %c0_1 = arith.constant 0 : index
    %3 = vector.load %arg2[%c0, %c0_1] : memref<16x32xf32, #tpu.memory_space<vmem>>, vector<16x32xf32>
    %c0_2 = arith.constant 0 : index
    %c0_3 = arith.constant 0 : index
    %4 = vector.load %arg3[%c0_2, %c0_3] : memref<16x1xi32, #tpu.memory_space<vmem>>, vector<16x1xi32>
    %cst = arith.constant dense<0xFF800000> : vector<16xf32>
    %5 = vector.multi_reduction <maximumf>, %3, %cst [1] : vector<16x32xf32> to vector<16xf32>
    %6 = vector.shape_cast %5 : vector<16xf32> to vector<16x1xf32>
    %7 = vector.broadcast %6 : vector<16x1xf32> to vector<16x32xf32>
    %8 = arith.subf %3, %7 : vector<16x32xf32>
    %9 = math.exp %8 : vector<16x32xf32>
    %cst_4 = arith.constant dense<0.000000e+00> : vector<16xf32>
    %10 = vector.multi_reduction <add>, %9, %cst_4 [1] : vector<16x32xf32> to vector<16xf32>
    %11 = vector.shape_cast %10 : vector<16xf32> to vector<16x1xf32>
    %12 = math.log %11 : vector<16x1xf32>
    %13 = arith.addf %6, %12 : vector<16x1xf32>
    %cst_5 = arith.constant dense<0.000000e+00> : vector<16xf32>
    %14 = vector.multi_reduction <add>, %3, %cst_5 [1] : vector<16x32xf32> to vector<16xf32>
    %15 = vector.shape_cast %14 : vector<16xf32> to vector<16x1xf32>
    %c1_i32 = arith.constant 1 : i32
    %16 = arith.muli %arg0, %c1_i32 : i32
    %17 = arith.addi %16, %arg1 : i32
    %c16_i32 = arith.constant 16 : i32
    %18 = arith.muli %17, %c16_i32 : i32
    %19 = tpu.iota {dimensions = array<i32: 0>} : vector<16x1xi32>
    %20 = vector.broadcast %18 : i32 to vector<16x1xi32>
    %21 = arith.addi %20, %19 : vector<16x1xi32>
    %c16_i32_6 = arith.constant 16 : i32
    %22 = vector.broadcast %c16_i32_6 : i32 to vector<16x1xi32>
    %23 = arith.cmpi slt, %21, %22 : vector<16x1xi32>
    %24 = arith.extui %23 : vector<16x1xi1> to vector<16x1xi32>
    %25 = arith.sitofp %24 : vector<16x1xi32> to vector<16x1xf32>
    %cst_7 = arith.constant 3.200000e+01 : f32
    %26 = vector.broadcast %cst_7 : f32 to vector<16x1xf32>
    %27 = arith.mulf %26, %13 : vector<16x1xf32>
    %28 = arith.subf %27, %15 : vector<16x1xf32>
    %29 = arith.mulf %28, %25 : vector<16x1xf32>
    %30 = tpu.iota {dimensions = array<i32: 1>} : vector<16x32xi32>
    %31 = vector.broadcast %4 : vector<16x1xi32> to vector<16x32xi32>
    %32 = arith.cmpi eq, %30, %31 : vector<16x32xi32>
    %cst_8 = arith.constant 0.000000e+00 : f32
    %33 = vector.broadcast %cst_8 : f32 to vector<16x32xf32>
    %34 = arith.select %32, %3, %33 : vector<16x32xi1>, vector<16x32xf32>
    %cst_9 = arith.constant dense<0.000000e+00> : vector<16xf32>
    %35 = vector.multi_reduction <add>, %34, %cst_9 [1] : vector<16x32xf32> to vector<16xf32>
    %36 = vector.shape_cast %35 : vector<16xf32> to vector<16x1xf32>
    %c-100_i32 = arith.constant -100 : i32
    %37 = vector.broadcast %c-100_i32 : i32 to vector<16x1xi32>
    %38 = arith.cmpi ne, %4, %37 : vector<16x1xi32>
    %39 = arith.extui %38 : vector<16x1xi1> to vector<16x1xi32>
    %40 = arith.sitofp %39 : vector<16x1xi32> to vector<16x1xf32>
    %41 = arith.subf %13, %36 : vector<16x1xf32>
    %42 = arith.mulf %41, %40 : vector<16x1xf32>
    %43 = vector.shape_cast %29 : vector<16x1xf32> to vector<1x16x1xf32>
    %cst_10 = arith.constant dense<0.000000e+00> : vector<1xf32>
    %44 = vector.multi_reduction <add>, %43, %cst_10 [1, 2] : vector<1x16x1xf32> to vector<1xf32>
    %45 = vector.shape_cast %44 : vector<1xf32> to vector<1x1x1xf32>
    %46 = vector.extract %45[0, 0, 0] : f32 from vector<1x1x1xf32>
    %47 = vector.shape_cast %42 : vector<16x1xf32> to vector<1x16x1xf32>
    %cst_11 = arith.constant dense<0.000000e+00> : vector<1xf32>
    %48 = vector.multi_reduction <add>, %47, %cst_11 [1, 2] : vector<1x16x1xf32> to vector<1xf32>
    %49 = vector.shape_cast %48 : vector<1xf32> to vector<1x1x1xf32>
    %50 = vector.extract %49[0, 0, 0] : f32 from vector<1x1x1xf32>
    %51 = vector.shape_cast %40 : vector<16x1xf32> to vector<1x16x1xf32>
    %cst_12 = arith.constant dense<0.000000e+00> : vector<1xf32>
    %52 = vector.multi_reduction <add>, %51, %cst_12 [1, 2] : vector<1x16x1xf32> to vector<1xf32>
    %53 = vector.shape_cast %52 : vector<1xf32> to vector<1x1x1xf32>
    %54 = vector.extract %53[0, 0, 0] : f32 from vector<1x1x1xf32>
    %55 = tpu.iota {dimensions = array<i32: 0>} : vector<8x128xi32>
    %c0_i32_13 = arith.constant 0 : i32
    %56 = vector.broadcast %c0_i32_13 : i32 to vector<8x128xi32>
    %57 = arith.cmpi eq, %55, %56 : vector<8x128xi32>
    %c1_i32_14 = arith.constant 1 : i32
    %58 = vector.broadcast %c1_i32_14 : i32 to vector<8x128xi32>
    %59 = arith.cmpi eq, %55, %58 : vector<8x128xi32>
    %c2_i32 = arith.constant 2 : i32
    %60 = vector.broadcast %c2_i32 : i32 to vector<8x128xi32>
    %61 = arith.cmpi eq, %55, %60 : vector<8x128xi32>
    %cst_15 = arith.constant 0.000000e+00 : f32
    %62 = vector.broadcast %54 : f32 to vector<8x128xf32>
    %63 = vector.broadcast %cst_15 : f32 to vector<8x128xf32>
    %64 = arith.select %61, %62, %63 : vector<8x128xi1>, vector<8x128xf32>
    %65 = vector.broadcast %50 : f32 to vector<8x128xf32>
    %66 = arith.select %59, %65, %64 : vector<8x128xi1>, vector<8x128xf32>
    %67 = vector.broadcast %46 : f32 to vector<8x128xf32>
    %68 = arith.select %57, %67, %66 : vector<8x128xi1>, vector<8x128xf32>
    %c0_16 = arith.constant 0 : index
    %c0_17 = arith.constant 0 : index
    %69 = vector.load %arg5[%c0_16, %c0_17] : memref<8x128xf32, #tpu.memory_space<vmem>>, vector<8x128xf32>
    %70 = arith.addf %69, %68 : vector<8x128xf32>
    %c0_18 = arith.constant 0 : index
    %c0_19 = arith.constant 0 : index
    %71 = vector.load %arg5[%c0_18, %c0_19] : memref<8x128xf32, #tpu.memory_space<vmem>>, vector<8x128xf32>
    tpu.vector_store %arg5[%c0_18, %c0_19], %70 {strides = array<i32>} : memref<8x128xf32, #tpu.memory_space<vmem>>, vector<8x128xf32>,
    %c0_i32_20 = arith.constant 0 : i32
    %72 = arith.cmpi eq, %arg1, %c0_i32_20 : i32
    %73 = arith.extui %72 : i1 to i32
    %c0_i32_21 = arith.constant 0 : i32
    %74 = arith.cmpi ne, %73, %c0_i32_21 : i32
    scf.if %74 {
      %c0_22 = arith.constant 0 : index
      %c0_23 = arith.constant 0 : index
      %75 = vector.load %arg5[%c0_22, %c0_23] : memref<8x128xf32, #tpu.memory_space<vmem>>, vector<8x128xf32>
      %76 = vector.shape_cast %75 : vector<8x128xf32> to vector<1x8x128xf32>
      %c0_24 = arith.constant 0 : index
      %c0_25 = arith.constant 0 : index
      %c0_26 = arith.constant 0 : index
      %77 = vector.load %arg4[%c0_24, %c0_25, %c0_26] : memref<1x8x128xf32, #tpu.memory_space<vmem>>, vector<1x8x128xf32>
      tpu.vector_store %arg4[%c0_24, %c0_25, %c0_26], %76 {strides = array<i32>} : memref<1x8x128xf32, #tpu.memory_space<vmem>>, vector<1x8x128xf32>,
    } else {
    }
    return
  }
  func.func @transform_0(%arg0: i32, %arg1: i32) -> (i32, i32) {
    %c1_i32 = arith.constant 1 : i32
    %0 = arith.muli %arg0, %c1_i32 : i32
    %1 = arith.addi %0, %arg1 : i32
    %c0_i32 = arith.constant 0 : i32
    %c0_i32_0 = arith.constant 0 : i32
    return %1, %c0_i32 : i32, i32
  }
  func.func @transform_1(%arg0: i32, %arg1: i32) -> (i32, i32) {
    %c1_i32 = arith.constant 1 : i32
    %0 = arith.muli %arg0, %c1_i32 : i32
    %1 = arith.addi %0, %arg1 : i32
    %c0_i32 = arith.constant 0 : i32
    %c0_i32_0 = arith.constant 0 : i32
    return %1, %c0_i32 : i32, i32
  }
  func.func @transform_2(%arg0: i32, %arg1: i32) -> (i32, i32, i32) {
    %c0_i32 = arith.constant 0 : i32
    %c0_i32_0 = arith.constant 0 : i32
    %c0_i32_1 = arith.constant 0 : i32
    return %arg0, %c0_i32, %c0_i32_0 : i32, i32, i32
  }
}

</mosaic_0001>

<llo_original>
// kernel: tpu_custom_call.1
$region0: #{tpu_custom_call.1}
  #allocation0 [shape = 'u32[]', space=smem, size = 0x4, offset = 0x4, fixed_abs, tag = 'smem constant byte address 0x4 - core index']
  #allocation1 [shape = 'u32[72,128]{1,0:T(1,128)}', space=vmem, size = 0x9000, scoped, tag = 'internal scratch']
  #allocation2 [shape = 'f32[8,128]{1,0:T(8,128)}', space=vmem, size = 0x1000, scoped, tag = 'scratch operand']
  %s0 = inlined_call_operand.vmem [shape: f32[16,32], index: 0, kind: input, shape index: {}]
  %s1 = inlined_call_operand.vmem [shape: s32[16,1], index: 1, kind: input, shape index: {}]
  %s2 = inlined_call_operand.hbm [shape: f32[1,8,128], index: 2, kind: output, shape index: {}]
  %s3 = sld [smem:[#allocation0]]
  $region26: #{tpu_custom_call.1} parent=0
    _
  %s5 = ssub.s32 1, %s3
  %s6 = scalar_select 0, %s5, %s3
  $region1: #{tpu_custom_call.1} parent=0
    #allocation3 [shape = 'u8[4096]{0}', space=vmem, size = 0x1000, scoped, tag = 'output window, operand 0, single buffered']
    #allocation4 [shape = 's32[1]{0}', space=sflag, size = 0x4, scoped, tag = 'scoped memory for tpu_custom_call.1']
    %7 = vsyncpa [#allocation4], 0
    // Predicated region
    $region2: #{tpu_custom_call.1} parent=1 // pred_check
      _
    $region3: #{tpu_custom_call.1} parent=1 // pred_check_branch
      %9 = sbr.rel (0) target = $region5
    $region4: #{tpu_custom_call.1} parent=1 // pred_region
      %s10 = sadd.s32 0, 0
      %s11 = smul.u32 2, %s10
      %p12 = scmp.lt.s32.totalorder %s11, 1
      %s13 = scalar_select %p12, %s11, 1
      %s14 = smul.addr %s13, 8
      %s15 = scalar_lea.vmem %s0, %s14
      %s16 = sadd.s32 0, 0
      %s17 = smul.u32 2, %s16
    $region5: #{tpu_custom_call.1} parent=1 // pred_fallthru
      _
    // Predicated region
    $region6: #{tpu_custom_call.1} parent=1 // pred_check
      _
    $region7: #{tpu_custom_call.1} parent=1 // pred_check_branch
      %19 = sbr.rel (0) target = $region9
    $region8: #{tpu_custom_call.1} parent=1 // pred_region
      %s20 = sadd.s32 0, 0
      %s21 = smul.u32 2, %s20
      %p22 = scmp.lt.s32.totalorder %s21, 1
      %s23 = scalar_select %p22, %s21, 1
      %s24 = smul.addr %s23, 8
      %s25 = scalar_lea.vmem %s1, %s24
      %s26 = sadd.s32 0, 0
      %s27 = smul.u32 2, %s26
    $region9: #{tpu_custom_call.1} parent=1 // pred_fallthru
      _
    %s28 = sadd.s32 0, 0
    %s29 = smul.u32 2, %s28
    %p30 = scmp.lt.s32.totalorder %s29, 1
    %s31 = scalar_select %p30, %s29, 1
    %s32 = smul.addr %s31, 8
    %s33 = scalar_lea.vmem %s0, %s32
    %s34 = sadd.s32 0, 0
    %s35 = smul.u32 2, %s34
    %p36 = scmp.lt.s32.totalorder %s35, 1
    %s37 = scalar_select %p36, %s35, 1
    %s38 = smul.addr %s37, 8
    %s39 = scalar_lea.vmem %s1, %s38
    %s40 = sadd.s32 0, 0
    %s41 = smul.u32 2, %s40
    %p42 = scmp.lt.s32.totalorder %s41, 1
    %s43 = scalar_select %p42, %s41, 1
    %s44 = smul.addr %s43, 8
    %s45 = scalar_lea.vmem %s0, %s44
    %s46 = sadd.s32 0, 0
    %s47 = smul.u32 2, %s46
    %s48 = sadd.s32 0, 0
    %s49 = smul.u32 2, %s48
    %p50 = scmp.lt.s32.totalorder %s49, 1
    %s51 = scalar_select %p50, %s49, 1
    %s52 = smul.addr %s51, 8
    %s53 = scalar_lea.vmem %s1, %s52
    %s54 = sadd.s32 0, 0
    %s55 = smul.u32 2, %s54
    %p56 = scmp.eq.s32.totalorder 0, 0
    // Predicated region
    $region10: #{tpu_custom_call.1} parent=1 // pred_check
      %p57 = pneg %p56
    $region11: #{tpu_custom_call.1} parent=1 // pred_check_branch
      %59 = sbr.rel (%p57) target = $region13
    $region12: #{tpu_custom_call.1} parent=1 // pred_region
      %60 = vst [vmem:[#allocation2] sm:$0xff] 0.0
    $region13: #{tpu_custom_call.1} parent=1 // pred_fallthru
      _
    %v61 = vld [vmem:[%s45] sm:$0xff]
    %v62 = vld [vmem:[%s45 + $0x8] sm:$0xff]
    %v63 = vld [vmem:[%s53] sm:$0xff]
    %v64 = vld [vmem:[%s53 + $0x8] sm:$0xff]
    %vm65 = vcmask 261120
    %v66 = vsel %vm65, %v61, -inf
    %67 = vmax.xlane.f32.xlu0 %v66
    %v68 = vpop.xlane.xlu0 %67
    %v69 = vsel %vm65, %v62, -inf
    %70 = vmax.xlane.f32.xlu0 %v69
    %v71 = vpop.xlane.xlu0 %70
    %v72 = vsub.f32 %v61, %v68
    %v73 = vsub.f32 %v62, %v71
    %v74 = vmul.f32 %v72, 1.442695
    %v75 = vpow.pop %v74
    %v76 = vmul.f32 %v73, 1.442695
    %v77 = vpow.pop %v76
    %v78 = vsel %vm65, %v75, 0.0
    %79 = vadd.xlane.f32.xlu0 %v78
    %v80 = vpop.xlane.xlu0 %79
    %v81 = vsel %vm65, %v77, 0.0
    %82 = vadd.xlane.f32.xlu0 %v81
    %v83 = vpop.xlane.xlu0 %82
    %v84 = vlog2.pop %v80
    %v85 = vmul.f32 %v84, 0.6931472
    %v86 = vlog2.pop %v83
    %v87 = vmul.f32 %v86, 0.6931472
    %v88 = vadd.f32 %v68, %v85
    %v89 = vadd.f32 %v71, %v87
    %v90 = vsel %vm65, %v61, 0.0
    %91 = vadd.xlane.f32.xlu0 %v90
    %v92 = vpop.xlane.xlu0 %91
    %v93 = vsel %vm65, %v62, 0.0
    %94 = vadd.xlane.f32.xlu0 %v93
    %v95 = vpop.xlane.xlu0 %94
    %s96 = sadd.s32 0, 0
    %s97 = smul.u32 %s96, 16
    %v98 = vlaneseq
    %v99 = vshrl.u32 %v98, 7
    %v100 = vadd.s32 %v99, 8
    %v101 = vstv %s97
    %v102 = vadd.s32 %v101, %v99
    %v103 = vadd.s32 %v101, %v100
    %vm104 = vcmp.lt.s32.totalorder %v102, 16
    %vm105 = vcmp.lt.s32.totalorder %v103, 16
    %v106 = vsel %vm104, 1, 0
    %v107 = vsel %vm105, 1, 0
    %v108 = vcvt.s32.f32 %v106
    %v109 = vcvt.s32.f32 %v107
    %v110 = vmul.f32 %v88, 32.0
    %v111 = vmul.f32 %v89, 32.0
    %v112 = vsub.f32 %v110, %v92
    %v113 = vsub.f32 %v111, %v95
    %v114 = vmul.f32 %v112, %v108
    %v115 = vmul.f32 %v113, %v109
    %v116 = vlaneseq
    %v117 = vand.u32 %v116, 127
    %118 = vset.pattern.permute.xlu0 0
    %119 = vperm.xlu0 %118, %v63
    %v120 = vpop.permute.xlu0 %119
    %121 = vset.pattern.permute.xlu0 0
    %122 = vperm.xlu0 %121, %v64
    %v123 = vpop.permute.xlu0 %122
    %vm124 = vcmp.eq.s32.totalorder %v117, %v120
    %vm125 = vcmp.eq.s32.totalorder %v117, %v123
    %v126 = vsel %vm124, %v61, 0.0
    %v127 = vsel %vm125, %v62, 0.0
    %v128 = vsel %vm65, %v126, 0.0
    %129 = vadd.xlane.f32.xlu0 %v128
    %v130 = vpop.xlane.xlu0 %129
    %v131 = vsel %vm65, %v127, 0.0
    %132 = vadd.xlane.f32.xlu0 %v131
    %v133 = vpop.xlane.xlu0 %132
    %vm134 = vcmp.ne.s32.totalorder %v63, 4294967196
    %vm135 = vcmp.ne.s32.totalorder %v64, 4294967196
    %v136 = vsel %vm134, 1, 0
    %v137 = vsel %vm135, 1, 0
    %v138 = vcvt.s32.f32 %v136
    %v139 = vcvt.s32.f32 %v137
    %v140 = vsub.f32 %v88, %v130
    %v141 = vsub.f32 %v89, %v133
    %v142 = vmul.f32 %v140, %v138
    %v143 = vmul.f32 %v141, %v139
    %vm144 = vcmask 7168
    %v145 = vsel %vm144, %v114, 0.0
    %v146 = vsel %vm144, %v115, 0.0
    %v147 = vadd.f32 %v145, %v146
    %148 = vadd.xlane.f32.xlu0 %v147
    %v149 = vpop.xlane.xlu0 %148
    %v150 = vrot.slane %v149, 4
    %v151 = vadd.f32 %v149, %v150
    %v152 = vrot.slane %v151, 2
    %v153 = vadd.f32 %v151, %v152
    %v154 = vrot.slane %v153, 1
    %v155 = vadd.f32 %v153, %v154
    %s156 = vtos %v155
    %v157 = vsel %vm144, %v142, 0.0
    %v158 = vsel %vm144, %v143, 0.0
    %v159 = vadd.f32 %v157, %v158
    %160 = vadd.xlane.f32.xlu0 %v159
    %v161 = vpop.xlane.xlu0 %160
    %v162 = vrot.slane %v161, 4
    %v163 = vadd.f32 %v161, %v162
    %v164 = vrot.slane %v163, 2
    %v165 = vadd.f32 %v163, %v164
    %v166 = vrot.slane %v165, 1
    %v167 = vadd.f32 %v165, %v166
    %s168 = vtos %v167
    %v169 = vsel %vm144, %v138, 0.0
    %v170 = vsel %vm144, %v139, 0.0
    %v171 = vadd.f32 %v169, %v170
    %172 = vadd.xlane.f32.xlu0 %v171
    %v173 = vpop.xlane.xlu0 %172
    %v174 = vrot.slane %v173, 4
    %v175 = vadd.f32 %v173, %v174
    %v176 = vrot.slane %v175, 2
    %v177 = vadd.f32 %v175, %v176
    %v178 = vrot.slane %v177, 1
    %v179 = vadd.f32 %v177, %v178
    %s180 = vtos %v179
    %vm181 = vcmp.eq.s32.totalorder %v99, 0
    %vm182 = vcmp.eq.s32.totalorder %v99, 1
    %vm183 = vcmp.eq.s32.totalorder %v99, 2
    %v184 = vstv %s180
    %v185 = vsel %vm183, %v184, 0.0
    %v186 = vstv %s168
    %v187 = vsel %vm182, %v186, %v185
    %v188 = vstv %s156
    %v189 = vsel %vm181, %v188, %v187
    %v190 = vld [vmem:[#allocation2] sm:$0xff]
    %v191 = vadd.f32 %v190, %v189
    %192 = vst [vmem:[#allocation2] sm:$0xff] %v191
    // Predicated region
    $region14: #{tpu_custom_call.1} parent=1 // pred_check
      %p193 = pneg %p56
    $region15: #{tpu_custom_call.1} parent=1 // pred_check_branch
      %195 = sbr.rel (%p193) target = $region17
    $region16: #{tpu_custom_call.1} parent=1 // pred_region
      %v196 = vld [vmem:[#allocation2] sm:$0xff]
      %197 = vst [vmem:[#allocation3] sm:$0xff] %v196
    $region17: #{tpu_custom_call.1} parent=1 // pred_fallthru
      _
    // Predicated region
    $region18: #{tpu_custom_call.1} parent=1 // pred_check
      _
    $region19: #{tpu_custom_call.1} parent=1 // pred_check_branch
      %199 = sbr.rel (0) target = $region21
    $region20: #{tpu_custom_call.1} parent=1 // pred_region
      %201 = vsyncadd [#allocation4], 0
      %s203 = sshll.u32 [#allocation3], 4
      %s204 = int_to_ptr.vmem [resolvable:$true] %s203
      %s205 = sshll.u32 %s2, 4
      %s206 = int_to_ptr.hbm [resolvable:$true] %s205
      %208 = dma.vmem_to_hbm [thread:$0]  %s204, 128, %s206, [#allocation4]
    $region21: #{tpu_custom_call.1} parent=1 // pred_fallthru
      _
    // Predicated region
    $region22: #{tpu_custom_call.1} parent=1 // pred_check
      _
    $region23: #{tpu_custom_call.1} parent=1 // pred_check_branch
      %210 = sbr.rel (0) target = $region25
    $region24: #{tpu_custom_call.1} parent=1 // pred_region
      %212 = dma.done [#allocation4], 128
    $region25: #{tpu_custom_call.1} parent=1 // pred_fallthru
      _
    %213 = vsyncpa [#allocation4], 1

</llo_original>
